<compile_context>
chip_gen: v7x
topology: tpu7x:2x2x1
jax: 0.10.0
libtpu: 0.0.40
codegen_flags: <defaults>
</compile_context>

<pallas_src>
import math

import jax
import jax.numpy as jnp
from jax.experimental import pallas as pl
from jax.experimental.pallas import tpu as pltpu

_VMEM_LIMIT = 64 * 1024 * 1024


def _pick_tile(dim, pref, align):
    """Largest tile <= pref that divides dim and is a multiple of `align`,
    else the full dim (full-dim blocks are always legal)."""
    if dim <= pref:
        return dim
    t = pref
    while t >= align:
        if dim % t == 0:
            return t
        t //= 2
    # TODO(synk): non-divisible real shapes (e.g. V=30522, M=B*511) should be
    # padded to tile multiples; here we fall back to a single full block.
    return dim


# -----------------------------------------------------------------------------
# Pallas kernel 1: tiled matmul + bias   (o = a @ b + bias), bf16 MXU, f32 acc
# -----------------------------------------------------------------------------
def _matmul_bias_kernel(a_ref, b_ref, bias_ref, o_ref, acc_ref):
    k = pl.program_id(2)

    @pl.when(k == 0)
    def _():
        acc_ref[...] = jnp.zeros_like(acc_ref)

    acc_ref[...] += jnp.dot(a_ref[...], b_ref[...],
                            preferred_element_type=jnp.float32)

    @pl.when(k == pl.num_programs(2) - 1)
    def _():
        o_ref[...] = (acc_ref[...] + bias_ref[...]).astype(o_ref.dtype)


def pallas_linear(x2d, w, b, *, tm=256, tn=256, tk=512):
    """x2d: [M, K], w: [K, N], b: [N] -> [M, N] f32 (bf16 MXU, f32 accumulate)."""
    M, K = x2d.shape
    N = w.shape[1]
    tm = _pick_tile(M, tm, 8)
    tn = _pick_tile(N, tn, 128)
    tk = _pick_tile(K, tk, 128)
    a = x2d.astype(jnp.bfloat16)
    wb = w.astype(jnp.bfloat16)
    bias = b.reshape(1, N).astype(jnp.float32)
    grid = (M // tm, N // tn, K // tk)
    return pl.pallas_call(
        _matmul_bias_kernel,
        out_shape=jax.ShapeDtypeStruct((M, N), jnp.float32),
        grid=grid,
        in_specs=[
            pl.BlockSpec((tm, tk), lambda i, j, k: (i, k)),
            pl.BlockSpec((tk, tn), lambda i, j, k: (k, j)),
            pl.BlockSpec((1, tn), lambda i, j, k: (0, j)),
        ],
        out_specs=pl.BlockSpec((tm, tn), lambda i, j, k: (i, j)),
        scratch_shapes=[pltpu.VMEM((tm, tn), jnp.float32)],
        compiler_params=pltpu.CompilerParams(
            dimension_semantics=("parallel", "parallel", "arbitrary"),
            vmem_limit_bytes=_VMEM_LIMIT),
        cost_estimate=pl.CostEstimate(
            flops=2 * M * N * K, transcendentals=0,
            bytes_accessed=M * K * 2 + K * N * 2 + M * N * 4 + N * 4),
    )(a, wb, bias)


# -----------------------------------------------------------------------------
# Pallas kernel 2: fused MLM decoder matmul + SLIM router (log1p(relu)*mask,
# running top-1 over vocab tiles).  Grid = (M tiles, V tiles, K tiles).
# -----------------------------------------------------------------------------
def _dec_router_kernel(t_ref, w_ref, b_ref, mask_ref,
                       r_ref, m_ref, id_ref,
                       acc_ref, rmax_ref, ridx_ref):
    v = pl.program_id(1)
    k = pl.program_id(2)
    nv = pl.num_programs(1)
    nk = pl.num_programs(2)

    @pl.when(jnp.logical_and(v == 0, k == 0))
    def _():
        # r >= 0 always, so -1 init guarantees the first tile wins.
        rmax_ref[...] = jnp.full_like(rmax_ref, -1.0)
        ridx_ref[...] = jnp.zeros_like(ridx_ref)

    @pl.when(k == 0)
    def _():
        acc_ref[...] = jnp.zeros_like(acc_ref)

    acc_ref[...] += jnp.dot(t_ref[...], w_ref[...],
                            preferred_element_type=jnp.float32)

    @pl.when(k == nk - 1)
    def _():
        logits = acc_ref[...] + b_ref[...]                          # (tm, tv) f32
        r = jnp.log1p(jnp.maximum(logits, 0.0)) * mask_ref[...]     # router repr
        r_ref[...] = r

        tv = r.shape[-1]
        tile_max = jnp.max(r, axis=-1, keepdims=True)               # (tm, 1)
        lane = jax.lax.broadcasted_iota(jnp.int32, r.shape, 1)
        tile_idx = jnp.min(jnp.where(r == tile_max, lane, tv),
                           axis=-1, keepdims=True) + v * tv         # global vocab id

        # running top-1; strict '>' keeps the earliest (smallest) index on ties,
        # matching the pure-JAX / torch.topk(min-index) reference behaviour.
        better = tile_max > rmax_ref[...]
        ridx_ref[...] = jnp.where(better, tile_idx, ridx_ref[...])
        rmax_ref[...] = jnp.where(better, tile_max, rmax_ref[...])

        @pl.when(v == nv - 1)
        def _():
            # lane-dense (tm, 128) outputs instead of last-dim-1 masked stores
            m_ref[...] = jnp.broadcast_to(rmax_ref[...], m_ref.shape)
            id_ref[...] = jnp.broadcast_to(ridx_ref[...], id_ref.shape)


def pallas_decoder_router(t2d, w_dec, b_dec, mask_rows, *, tm=256, tv=512, tk=512):
    """t2d: [M, H] f32, w_dec: [H, V], b_dec: [V], mask_rows: [M] float.
    Returns (r [M, V] f32, rowmax_bcast [M, 128] f32, argmax_bcast [M, 128] i32)."""
    M, H = t2d.shape
    V = w_dec.shape[1]
    tm = _pick_tile(M, tm, 8)
    tv = _pick_tile(V, tv, 128)
    tk = _pick_tile(H, tk, 128)
    a = t2d.astype(jnp.bfloat16)
    wb = w_dec.astype(jnp.bfloat16)
    bias = b_dec.reshape(1, V).astype(jnp.float32)
    mask2d = mask_rows.reshape(M, 1).astype(jnp.float32)
    grid = (M // tm, V // tv, H // tk)
    out_shapes = (
        jax.ShapeDtypeStruct((M, V), jnp.float32),      # r (router repr)
        jax.ShapeDtypeStruct((M, 128), jnp.float32),    # row max, lane-broadcast
        jax.ShapeDtypeStruct((M, 128), jnp.int32),      # argmax,  lane-broadcast
    )
    return pl.pallas_call(
        _dec_router_kernel,
        out_shape=out_shapes,
        grid=grid,
        in_specs=[
            pl.BlockSpec((tm, tk), lambda m, v, k: (m, k)),
            pl.BlockSpec((tk, tv), lambda m, v, k: (k, v)),
            pl.BlockSpec((1, tv), lambda m, v, k: (0, v)),
            pl.BlockSpec((tm, 1), lambda m, v, k: (m, 0)),
        ],
        out_specs=(
            pl.BlockSpec((tm, tv), lambda m, v, k: (m, v)),
            pl.BlockSpec((tm, 128), lambda m, v, k: (m, 0)),
            pl.BlockSpec((tm, 128), lambda m, v, k: (m, 0)),
        ),
        scratch_shapes=[
            pltpu.VMEM((tm, tv), jnp.float32),   # matmul accumulator
            pltpu.VMEM((tm, 1), jnp.float32),    # running row max
            pltpu.VMEM((tm, 1), jnp.int32),      # running argmax
        ],
        compiler_params=pltpu.CompilerParams(
            dimension_semantics=("parallel", "arbitrary", "arbitrary"),
            vmem_limit_bytes=_VMEM_LIMIT),
        cost_estimate=pl.CostEstimate(
            flops=2 * M * V * H, transcendentals=M * V,
            bytes_accessed=M * H * 2 + H * V * 2 + M * V * 4 + V * 4 + M * 4),
    )(a, wb, bias, mask2d)


# -----------------------------------------------------------------------------
# Pallas kernel 3: sparse gating pass  sparse = where(r >= rowmax, r, 0)
# -----------------------------------------------------------------------------
def _sparse_kernel(r_ref, m_ref, o_ref):
    r = r_ref[...]
    m = m_ref[...][:, 0:1]           # all 128 lanes hold the same row max
    o_ref[...] = jnp.where(r >= m, r, jnp.zeros_like(r))


def pallas_sparse_gate(r, m_bcast, *, tm=256, tv=512):
    M, V = r.shape
    tm = _pick_tile(M, tm, 8)
    tv = _pick_tile(V, tv, 128)
    grid = (M // tm, V // tv)
    return pl.pallas_call(
        _sparse_kernel,
        out_shape=jax.ShapeDtypeStruct((M, V), jnp.float32),
        grid=grid,
        in_specs=[
            pl.BlockSpec((tm, tv), lambda m, v: (m, v)),
            pl.BlockSpec((tm, 128), lambda m, v: (m, 0)),
        ],
        out_specs=pl.BlockSpec((tm, tv), lambda m, v: (m, v)),
        compiler_params=pltpu.CompilerParams(
            dimension_semantics=("parallel", "parallel"),
            vmem_limit_bytes=_VMEM_LIMIT),
        cost_estimate=pl.CostEstimate(
            flops=M * V, transcendentals=0,
            bytes_accessed=2 * M * V * 4 + M * 128 * 4),
    )(r, m_bcast)


# -----------------------------------------------------------------------------
# Small deterministic BERT-like MaskedLM (1 layer), glue in plain JAX.
# -----------------------------------------------------------------------------
def init_params(key, vocab, hidden, ffn, max_pos):
    ks = jax.random.split(key, 16)
    n = lambda k, shape: (jax.random.normal(k, shape, jnp.float32) * 0.02)
    p = {
        "tok_emb": n(ks[0], (vocab, hidden)),
        "pos_emb": n(ks[1], (max_pos, hidden)),
        "ln_emb_g": jnp.ones((hidden,), jnp.float32),
        "ln_emb_b": jnp.zeros((hidden,), jnp.float32),
        "wq": n(ks[2], (hidden, hidden)), "bq": jnp.zeros((hidden,), jnp.float32),
        "wk": n(ks[3], (hidden, hidden)), "bk": jnp.zeros((hidden,), jnp.float32),
        "wv": n(ks[4], (hidden, hidden)), "bv": jnp.zeros((hidden,), jnp.float32),
        "wo": n(ks[5], (hidden, hidden)), "bo": jnp.zeros((hidden,), jnp.float32),
        "ln1_g": jnp.ones((hidden,), jnp.float32),
        "ln1_b": jnp.zeros((hidden,), jnp.float32),
        "w_ffn1": n(ks[6], (hidden, ffn)), "b_ffn1": jnp.zeros((ffn,), jnp.float32),
        "w_ffn2": n(ks[7], (ffn, hidden)), "b_ffn2": jnp.zeros((hidden,), jnp.float32),
        "ln2_g": jnp.ones((hidden,), jnp.float32),
        "ln2_b": jnp.zeros((hidden,), jnp.float32),
        "w_head": n(ks[8], (hidden, hidden)), "b_head": jnp.zeros((hidden,), jnp.float32),
        "ln_head_g": jnp.ones((hidden,), jnp.float32),
        "ln_head_b": jnp.zeros((hidden,), jnp.float32),
        "w_dec": n(ks[9], (hidden, vocab)), "b_dec": jnp.zeros((vocab,), jnp.float32),
    }
    return p


def _layer_norm(x, g, b, eps=1e-12):
    mu = jnp.mean(x, axis=-1, keepdims=True)
    var = jnp.mean((x - mu) ** 2, axis=-1, keepdims=True)
    return (x - mu) / jnp.sqrt(var + eps) * g + b


def bert_mlm_head_hidden(params, input_ids, attention_mask, linear_fn, num_heads=4):
    """Transformer trunk + MLM head transform (dense/gelu/LN). Returns [B, S, H];
    the vocab decoder matmul is applied separately (fused with the router)."""
    # TODO(synk): real SlimEncoder uses a pretrained 12-layer bert-base-uncased;
    # here a 1-layer deterministic surrogate with identical op structure is used.
    B, S = input_ids.shape
    H = params["tok_emb"].shape[1]
    dh = H // num_heads

    x = params["tok_emb"][input_ids] + params["pos_emb"][jnp.arange(S)][None, :, :]
    x = _layer_norm(x, params["ln_emb_g"], params["ln_emb_b"])

    xf = x.reshape(B * S, H)
    q = linear_fn(xf, params["wq"], params["bq"]).reshape(B, S, num_heads, dh).transpose(0, 2, 1, 3)
    k = linear_fn(xf, params["wk"], params["bk"]).reshape(B, S, num_heads, dh).transpose(0, 2, 1, 3)
    v = linear_fn(xf, params["wv"], params["bv"]).reshape(B, S, num_heads, dh).transpose(0, 2, 1, 3)

    # TODO(synk): attention softmax/einsums, layernorms, gelu and embedding
    # gather stay in plain JAX (XLA) rather than Pallas kernels.
    scores = jnp.einsum("bhqd,bhkd->bhqk", q, k) / math.sqrt(dh)
    bias = (1.0 - attention_mask.astype(jnp.float32))[:, None, None, :] * -1e9
    attn = jax.nn.softmax(scores + bias, axis=-1)
    ctx = jnp.einsum("bhqk,bhkd->bhqd", attn, v).transpose(0, 2, 1, 3).reshape(B * S, H)

    attn_out = linear_fn(ctx, params["wo"], params["bo"]).reshape(B, S, H)
    x = _layer_norm(x + attn_out, params["ln1_g"], params["ln1_b"])

    xf = x.reshape(B * S, H)
    h = jax.nn.gelu(linear_fn(xf, params["w_ffn1"], params["b_ffn1"]), approximate=False)
    ffn_out = linear_fn(h, params["w_ffn2"], params["b_ffn2"]).reshape(B, S, H)
    x = _layer_norm(x + ffn_out, params["ln2_g"], params["ln2_b"])

    xf = x.reshape(B * S, H)
    t = jax.nn.gelu(linear_fn(xf, params["w_head"], params["b_head"]), approximate=False)
    t = _layer_norm(t, params["ln_head_g"], params["ln_head_b"])
    return t.reshape(B, S, H)


# -----------------------------------------------------------------------------
# SlimEncoder.forward equivalent
# -----------------------------------------------------------------------------
def slim_encoder_forward(params, input_ids, attention_mask, topk=1):
    assert topk == 1  # TODO(synk): general top-k (k>1) gating not implemented in-kernel.
    B, S = input_ids.shape
    H = params["tok_emb"].shape[1]
    V = params["w_dec"].shape[1]
    S1 = S - 1

    t = bert_mlm_head_hidden(params, input_ids, attention_mask, pallas_linear)  # [B, S, H]

    # Drop the [CLS] position on the small H-wide tensor (never slice the
    # vocab-wide logits slab — it is never materialized in HBM at all).
    t_s = t[:, 1:, :].reshape(B * S1, H)
    mask_s = attention_mask[:, 1:]
    mask_rows = mask_s.reshape(B * S1).astype(jnp.float32)

    # Fused decoder matmul + log1p(relu)*mask + running top-1 over vocab tiles.
    r, m_bcast, id_bcast = pallas_decoder_router(
        t_s, params["w_dec"], params["b_dec"], mask_rows)
    sparse = pallas_sparse_gate(r, m_bcast)

    return {
        "attention_mask": mask_s,                                   # [B, S-1] int32
        "expert_ids": id_bcast[:, :1].reshape(B, S1, 1),            # [B, S-1, 1] i32 (torch: i64)
        "expert_weights": m_bcast[:, :1].reshape(B, S1, 1),         # [B, S-1, 1] f32
        "sparse_weights": sparse.reshape(B, S1, V),                 # [B, S-1, V] f32
    }


# Pure-JAX reference (same bf16-MXU linears, jnp router) for correctness check.
def _bf16_linear(x, w, b):
    return jnp.dot(x.astype(jnp.bfloat16), w.astype(jnp.bfloat16),
                   preferred_element_type=jnp.float32) + b


def _reference_forward(params, input_ids, attention_mask):
    t = bert_mlm_head_hidden(params, input_ids, attention_mask, _bf16_linear)
    B, S, H = t.shape
    logits = _bf16_linear(t.reshape(B * S, H), params["w_dec"], params["b_dec"])
    logits = logits.reshape(B, S, -1)
    mask_s = attention_mask[:, 1:].astype(jnp.float32)
    r = jnp.log1p(jnp.maximum(logits[:, 1:, :], 0.0)) * mask_s[:, :, None]
    m = jnp.max(r, axis=-1, keepdims=True)
    V = r.shape[-1]
    lane = jax.lax.broadcasted_iota(jnp.int32, r.shape, 2)
    ids = jnp.min(jnp.where(r == m, lane, V), axis=-1, keepdims=True)
    sparse = jnp.where(r >= m, r, 0.0)
    return m, ids, sparse


if __name__ == "__main__":
    B, S, H, FFN, V, MAX_POS = 2, 9, 32, 64, 128, 16   # S-1 = 8 -> M1 = 16, V = 128

    key = jax.random.PRNGKey(0)
    k_ids, k_params = jax.random.split(key)
    input_ids = jax.random.randint(k_ids, (B, S), 0, V, dtype=jnp.int32)
    attention_mask = jnp.ones((B, S), jnp.int32).at[1, 6:].set(0)

    params = init_params(k_params, V, H, FFN, MAX_POS)

    out = slim_encoder_forward(params, input_ids, attention_mask, topk=1)
    jax.block_until_ready(out)

    # correctness check against pure-JAX reference (same bf16 matmul precision)
    ref_w, ref_ids, ref_sparse = _reference_forward(params, input_ids, attention_mask)
    assert jnp.allclose(out["expert_weights"], ref_w, atol=2e-3, rtol=2e-3), "expert_weights mismatch"
    assert jnp.all(out["expert_ids"] == ref_ids), "expert_ids mismatch"
    assert jnp.allclose(out["sparse_weights"], ref_sparse, atol=2e-3, rtol=2e-3), "sparse_weights mismatch"
    assert jnp.all(out["attention_mask"] == attention_mask[:, 1:])

    print("KERNEL_OK")
</pallas_src>

<mosaic_0001>
module attributes {stable_mosaic.version = 11 : i64} {
  func.func @_matmul_bias_kernel(%arg0: i32, %arg1: i32, %arg2: i32, %arg3: memref<18x32xbf16, #tpu.memory_space<vmem>>, %arg4: memref<32x32xbf16, #tpu.memory_space<vmem>>, %arg5: memref<1x32xf32, #tpu.memory_space<vmem>>, %arg6: memref<18x32xf32, #tpu.memory_space<vmem>>, %arg7: memref<18x32xf32, #tpu.memory_space<vmem>>) attributes {dimension_semantics = [#tpu.dimension_semantics<parallel>, #tpu.dimension_semantics<parallel>, #tpu.dimension_semantics<arbitrary>], iteration_bounds = array<i64: 1, 1, 1>, scalar_prefetch = 0 : i64, scratch_operands = 1 : i64, tpu.core_type = #tpu.core_type<tc>, window_params = [{transform_indices = @transform_0, window_bounds = array<i64: 18, 32>}, {transform_indices = @transform_1, window_bounds = array<i64: 32, 32>}, {transform_indices = @transform_2, window_bounds = array<i64: 1, 32>}, {transform_indices = @transform_3, window_bounds = array<i64: 18, 32>}]} {
    %c0_i32 = arith.constant 0 : i32
    %0 = arith.cmpi eq, %arg2, %c0_i32 : i32
    %1 = arith.extui %0 : i1 to i32
    %c0_i32_0 = arith.constant 0 : i32
    %2 = arith.cmpi ne, %1, %c0_i32_0 : i32
    scf.if %2 {
      %cst_10 = arith.constant 0.000000e+00 : f32
      %12 = vector.broadcast %cst_10 : f32 to vector<18x32xf32>
      %c0_11 = arith.constant 0 : index
      %c0_12 = arith.constant 0 : index
      %13 = vector.load %arg7[%c0_11, %c0_12] : memref<18x32xf32, #tpu.memory_space<vmem>>, vector<18x32xf32>
      tpu.vector_store %arg7[%c0_11, %c0_12], %12 {strides = array<i32>} : memref<18x32xf32, #tpu.memory_space<vmem>>, vector<18x32xf32>,
    } else {
    }
    %c0 = arith.constant 0 : index
    %c0_1 = arith.constant 0 : index
    %3 = vector.load %arg7[%c0, %c0_1] : memref<18x32xf32, #tpu.memory_space<vmem>>, vector<18x32xf32>
    %c0_2 = arith.constant 0 : index
    %c0_3 = arith.constant 0 : index
    %4 = vector.load %arg3[%c0_2, %c0_3] : memref<18x32xbf16, #tpu.memory_space<vmem>>, vector<18x32xbf16>
    %c0_4 = arith.constant 0 : index
    %c0_5 = arith.constant 0 : index
    %5 = vector.load %arg4[%c0_4, %c0_5] : memref<32x32xbf16, #tpu.memory_space<vmem>>, vector<32x32xbf16>
    %cst = arith.constant dense<0.000000e+00> : vector<18x32xf32>
    %6 = tpu.matmul %4, %5, %cst {dimension_numbers = #tpu.dot_dimension_numbers<[1], [0], [0], [1], [0, 0, 1, 1], [], []>} : vector<18x32xbf16>, vector<32x32xbf16>, vector<18x32xf32> -> vector<18x32xf32>
    %7 = arith.addf %3, %6 : vector<18x32xf32>
    %c0_6 = arith.constant 0 : index
    %c0_7 = arith.constant 0 : index
    %8 = vector.load %arg7[%c0_6, %c0_7] : memref<18x32xf32, #tpu.memory_space<vmem>>, vector<18x32xf32>
    tpu.vector_store %arg7[%c0_6, %c0_7], %7 {strides = array<i32>} : memref<18x32xf32, #tpu.memory_space<vmem>>, vector<18x32xf32>,
    %c0_i32_8 = arith.constant 0 : i32
    %9 = arith.cmpi eq, %arg2, %c0_i32_8 : i32
    %10 = arith.extui %9 : i1 to i32
    %c0_i32_9 = arith.constant 0 : i32
    %11 = arith.cmpi ne, %10, %c0_i32_9 : i32
    scf.if %11 {
      %c0_10 = arith.constant 0 : index
      %c0_11 = arith.constant 0 : index
      %12 = vector.load %arg7[%c0_10, %c0_11] : memref<18x32xf32, #tpu.memory_space<vmem>>, vector<18x32xf32>
      %c0_12 = arith.constant 0 : index
      %c0_13 = arith.constant 0 : index
      %13 = vector.load %arg5[%c0_12, %c0_13] : memref<1x32xf32, #tpu.memory_space<vmem>>, vector<1x32xf32>
      %14 = vector.broadcast %13 : vector<1x32xf32> to vector<18x32xf32>
      %15 = arith.addf %12, %14 : vector<18x32xf32>
      %c0_14 = arith.constant 0 : index
      %c0_15 = arith.constant 0 : index
      %16 = vector.load %arg6[%c0_14, %c0_15] : memref<18x32xf32, #tpu.memory_space<vmem>>, vector<18x32xf32>
      tpu.vector_store %arg6[%c0_14, %c0_15], %15 {strides = array<i32>} : memref<18x32xf32, #tpu.memory_space<vmem>>, vector<18x32xf32>,
    } else {
    }
    return
  }
  func.func @transform_0(%arg0: i32, %arg1: i32, %arg2: i32) -> (i32, i32) {
    %c0_i32 = arith.constant 0 : i32
    return %arg0, %arg2 : i32, i32
  }
  func.func @transform_1(%arg0: i32, %arg1: i32, %arg2: i32) -> (i32, i32) {
    %c0_i32 = arith.constant 0 : i32
    return %arg2, %arg1 : i32, i32
  }
  func.func @transform_2(%arg0: i32, %arg1: i32, %arg2: i32) -> (i32, i32) {
    %c0_i32 = arith.constant 0 : i32
    %c0_i32_0 = arith.constant 0 : i32
    return %c0_i32, %arg1 : i32, i32
  }
  func.func @transform_3(%arg0: i32, %arg1: i32, %arg2: i32) -> (i32, i32) {
    %c0_i32 = arith.constant 0 : i32
    return %arg0, %arg1 : i32, i32
  }
}

</mosaic_0001>

<llo_original>
// kernel: tpu_custom_call.1
$region0: #{tpu_custom_call.1}
  #allocation0 [shape = 'u32[]', space=smem, size = 0x4, offset = 0x4, fixed_abs, tag = 'smem constant byte address 0x4 - core index']
  #allocation1 [shape = 'u32[144,128]{1,0:T(1,128)}', space=vmem, size = 0x12000, scoped, tag = 'internal scratch']
  #allocation2 [shape = 'f32[18,32]{1,0:T(8,128)}', space=vmem, size = 0x3000, scoped, tag = 'scratch operand']
  %s0 = inlined_call_operand.hbm [shape: bf16[18,32], index: 0, kind: input, shape index: {}]
  %s1 = inlined_call_operand.hbm [shape: bf16[32,32], index: 1, kind: input, shape index: {}]
  %s2 = inlined_call_operand.hbm [shape: f32[1,32], index: 2, kind: input, shape index: {}]
  %s3 = inlined_call_operand.hbm [shape: f32[18,32], index: 3, kind: output, shape index: {}]
  %s4 = sld [smem:[#allocation0]]
  $region42: #{tpu_custom_call.1} parent=0
    _
  %s6 = ssub.s32 1, %s4
  %s7 = scalar_select 0, %s6, %s4
  $region1: #{tpu_custom_call.1} parent=0
    #allocation3 [shape = 'u8[6144]{0}', space=vmem, size = 0x1800, scoped, tag = 'input window, operand 0, single buffered']
    #allocation4 [shape = 's32[1]{0}', space=sflag, size = 0x4, scoped, tag = 'scoped memory for tpu_custom_call.1']
    #allocation5 [shape = 's32[1]{0}', space=sflag, size = 0x4, scoped, tag = 'scoped memory for tpu_custom_call.1']
    #allocation6 [shape = 'u8[8192]{0}', space=vmem, size = 0x2000, scoped, tag = 'input window, operand 1, single buffered']
    #allocation7 [shape = 's32[1]{0}', space=sflag, size = 0x4, scoped, tag = 'scoped memory for tpu_custom_call.1']
    #allocation8 [shape = 'u8[512]{0}', space=vmem, size = 0x400, scoped, tag = 'input window, operand 2, single buffered']
    #allocation9 [shape = 'u8[12288]{0}', space=vmem, size = 0x3000, scoped, tag = 'output window, operand 0, single buffered']
    %8 = vsyncpa [#allocation4], 0
    %9 = vsyncpa [#allocation7], 0
    %10 = vsyncpa [#allocation5], 0
    // Predicated region
    $region2: #{tpu_custom_call.1} parent=1 // pred_check
      _
    $region3: #{tpu_custom_call.1} parent=1 // pred_check_branch
      %12 = sbr.rel (0) target = $region5
    $region4: #{tpu_custom_call.1} parent=1 // pred_region
      %s14 = ssub.s32 192, 192
      %15 = vsyncadd [#allocation4], %s14
      %s16 = sshll.u32 [#allocation3], 4
      %s17 = int_to_ptr.vmem [resolvable:$true] %s16
      %22 = dma.hbm_to_vmem [thread:$0]  %s0, 192, %s17, [#allocation4], 64, 64, 4
    $region5: #{tpu_custom_call.1} parent=1 // pred_fallthru
      _
    // Predicated region
    $region6: #{tpu_custom_call.1} parent=1 // pred_check
      _
    $region7: #{tpu_custom_call.1} parent=1 // pred_check_branch
      %24 = sbr.rel (0) target = $region9
    $region8: #{tpu_custom_call.1} parent=1 // pred_region
      %s26 = ssub.s32 256, 256
      %27 = vsyncadd [#allocation7], %s26
      %s28 = sshll.u32 [#allocation6], 4
      %s29 = int_to_ptr.vmem [resolvable:$true] %s28
      %34 = dma.hbm_to_vmem [thread:$0]  %s1, 256, %s29, [#allocation7], 64, 64, 4
    $region9: #{tpu_custom_call.1} parent=1 // pred_fallthru
      _
    // Predicated region
    $region10: #{tpu_custom_call.1} parent=1 // pred_check
      _
    $region11: #{tpu_custom_call.1} parent=1 // pred_check_branch
      %36 = sbr.rel (0) target = $region13
    $region12: #{tpu_custom_call.1} parent=1 // pred_region
      %s38 = ssub.s32 16, 16
      %39 = vsyncadd [#allocation7], %s38
      %s41 = sshll.u32 [#allocation8], 4
      %s42 = int_to_ptr.vmem [resolvable:$true] %s41
      %44 = dma.hbm_to_vmem [thread:$0]  %s2, 16, %s42, [#allocation7]
    $region13: #{tpu_custom_call.1} parent=1 // pred_fallthru
      _
    // Predicated region
    $region14: #{tpu_custom_call.1} parent=1 // pred_check
      _
    $region15: #{tpu_custom_call.1} parent=1 // pred_check_branch
      %46 = sbr.rel (0) target = $region17
    $region16: #{tpu_custom_call.1} parent=1 // pred_region
      %47 = dma.done [#allocation4], 192
    $region17: #{tpu_custom_call.1} parent=1 // pred_fallthru
      _
    // Predicated region
    $region18: #{tpu_custom_call.1} parent=1 // pred_check
      _
    $region19: #{tpu_custom_call.1} parent=1 // pred_check_branch
      %49 = sbr.rel (0) target = $region21
    $region20: #{tpu_custom_call.1} parent=1 // pred_region
      %50 = dma.done [#allocation7], 256
    $region21: #{tpu_custom_call.1} parent=1 // pred_fallthru
      _
    // Predicated region
    $region22: #{tpu_custom_call.1} parent=1 // pred_check
      _
    $region23: #{tpu_custom_call.1} parent=1 // pred_check_branch
      %52 = sbr.rel (0) target = $region25
    $region24: #{tpu_custom_call.1} parent=1 // pred_region
      %53 = dma.done [#allocation7], 16
    $region25: #{tpu_custom_call.1} parent=1 // pred_fallthru
      _
    %p55 = scmp.eq.s32.totalorder 0, 0
    // Predicated region
    $region26: #{tpu_custom_call.1} parent=1 // pred_check
      %p56 = pneg %p55
    $region27: #{tpu_custom_call.1} parent=1 // pred_check_branch
      %58 = sbr.rel (%p56) target = $region29
    $region28: #{tpu_custom_call.1} parent=1 // pred_region
      %vm59 = vcmask 261120
      %60 = vst.msk [vmem:[#allocation2] sm:$0xff] %vm59, 0.0
      %61 = vst.msk [vmem:[#allocation2 + $0x8] sm:$0xff] %vm59, 0.0
      %vm62 = vcmask 254976
      %63 = vst.msk [vmem:[#allocation2 + $0x10] sm:$0x3] %vm62, 0.0
    $region29: #{tpu_custom_call.1} parent=1 // pred_fallthru
      _
    %v64 = vld [vmem:[#allocation2] sm:$0xff]
    %v65 = vld [vmem:[#allocation2 + $0x8] sm:$0xff]
    %v66 = vld [vmem:[#allocation2 + $0x10] sm:$0x3]
    %v67 = vld [vmem:[#allocation3] sm:$0xf]
    %v68 = vld [vmem:[#allocation3 + $0x4] sm:$0xf]
    %v69 = vld [vmem:[#allocation3 + $0x8] sm:$0x1]
    %v70 = vld [vmem:[#allocation6] sm:$0xf]
    %v71 = vld [vmem:[#allocation6 + $0x4] sm:$0xf]
    %v72 = vld [vmem:[#allocation6 + $0x8] sm:$0xf]
    %v73 = vld [vmem:[#allocation6 + $0xc] sm:$0xf]
    %v77 = vunpack.c.l.b16 %v67
    %v78 = vunpack.c.l.b16 %v68
    %v79 = vunpack.c.l.b16 %v69
    %v80 = vpack.c.b16 %v78, %v77
    %v81 = vpack.c.b16 %v79, %v79
    %v86 = vunpack.c.l.b16 %v70
    %v87 = vunpack.c.l.b16 %v71
    %v88 = vunpack.c.l.b16 %v72
    %v89 = vunpack.c.l.b16 %v73
    %v90 = vpack.c.b16 %v87, %v86
    %v91 = vpack.c.b16 %v89, %v88
    %vm94 = vcmask 261120
    %v96 = vsel %vm94, %v80, 0
    %v99 = vsel %vm94, %v81, 0
    %101 = vmatprep.subr.bf16.mxu0 0
    %102 = vmatpush1.bf16.msra.mxu0 %v90
    %103 = vmatprep.subr.bf16.mxu0 0
    %104 = vmatpush1.bf16.msra.mxu0 %v91
    %105 = vmatprep.subr.bf16.mxu0 0
    %106 = vmatpush1.bf16.msra.mxu0 0
    %107 = vmatprep.subr.bf16.mxu0 0
    %108 = vmatpush1.bf16.msra.mxu0 0
    %109 = vmatprep.subr.bf16.mxu0 0
    %110 = vmatpush1.bf16.msra.mxu0 0
    %111 = vmatprep.subr.bf16.mxu0 0
    %112 = vmatpush1.bf16.msra.mxu0 0
    %113 = vmatprep.subr.bf16.mxu0 0
    %114 = vmatpush1.bf16.msra.mxu0 0
    %115 = vmatprep.subr.bf16.mxu0 0
    %116 = vmatpush1.bf16.msra.mxu0 0
    %117 = vmatprep.subr.bf16.mxu0 0
    %118 = vmatpush1.bf16.msra.mxu0 0
    %119 = vmatprep.subr.bf16.mxu0 0
    %120 = vmatpush1.bf16.msra.mxu0 0
    %121 = vmatprep.subr.bf16.mxu0 0
    %122 = vmatpush1.bf16.msra.mxu0 0
    %123 = vmatprep.subr.bf16.mxu0 0
    %124 = vmatpush1.bf16.msra.mxu0 0
    %125 = vmatprep.subr.bf16.mxu0 0
    %126 = vmatpush1.bf16.msra.mxu0 0
    %127 = vmatprep.subr.bf16.mxu0 0
    %128 = vmatpush1.bf16.msra.mxu0 0
    %129 = vmatprep.subr.bf16.mxu0 0
    %130 = vmatpush1.bf16.msra.mxu0 0
    %131 = vmatprep.subr.bf16.mxu0 0
    %132 = vmatpush1.bf16.msra.mxu0 0
    %133 = vmatprep.mubr.bf16.mxu0 0
    %134 = vmatmul.mubr.bf16.gmra.mrb[0].mxu0 %v96
    %v135 = vpop.f32.mrb[0].mxu0
    %v136 = vadd.f32 0.0, %v135
    %v137 = vpop.f32.mrb[0].mxu0
    %v138 = vpop.f32.mrb[0].mxu0
    %v139 = vadd.f32 0.0, %v138
    %v140 = vpop.f32.mrb[0].mxu0
    %141 = vmatprep.mubr.bf16.mxu0 0
    %142 = vmatmul.mubr.bf16.gmra.mrb[0].mxu0 %v99
    %v143 = vpop.f32.mrb[0].mxu0
    %v144 = vadd.f32 0.0, %v143
    %v145 = vpop.f32.mrb[0].mxu0
    %v146 = vpop.f32.mrb[0].mxu0
    %v147 = vpop.f32.mrb[0].mxu0
    %148 = vdwg.mxu0
    %v149 = vadd.f32 %v64, %v136
    %v150 = vadd.f32 %v65, %v139
    %v151 = vadd.f32 %v66, %v144
    %152 = vst.msk [vmem:[#allocation2] sm:$0xff] %vm94, %v149
    %153 = vst.msk [vmem:[#allocation2 + $0x8] sm:$0xff] %vm94, %v150
    %vm154 = vcmask 254976
    %155 = vst.msk [vmem:[#allocation2 + $0x10] sm:$0x3] %vm154, %v151
    // Predicated region
    $region30: #{tpu_custom_call.1} parent=1 // pred_check
      %p156 = pneg %p55
    $region31: #{tpu_custom_call.1} parent=1 // pred_check_branch
      %158 = sbr.rel (%p156) target = $region33
    $region32: #{tpu_custom_call.1} parent=1 // pred_region
      %v159 = vld [vmem:[#allocation2] sm:$0xff]
      %v160 = vld [vmem:[#allocation2 + $0x8] sm:$0xff]
      %v161 = vld [vmem:[#allocation2 + $0x10] sm:$0x3]
      %v162 = vld [vmem:[#allocation8] sm:$0x1]
      %v164 = vlaneseq
      %v165 = vshrl.u32 %v164, 7
      %v166 = vsub.s32 0, %v165
      %v167 = vrot.slane %v162, %v166
      %v169 = vadd.f32 %v159, %v167
      %v170 = vadd.f32 %v160, %v167
      %v171 = vadd.f32 %v161, %v167
      %172 = vst.msk [vmem:[#allocation9] sm:$0xff] %vm94, %v169
      %173 = vst.msk [vmem:[#allocation9 + $0x8] sm:$0xff] %vm94, %v170
      %174 = vst.msk [vmem:[#allocation9 + $0x10] sm:$0x3] %vm154, %v171
    $region33: #{tpu_custom_call.1} parent=1 // pred_fallthru
      _
    // Predicated region
    $region34: #{tpu_custom_call.1} parent=1 // pred_check
      _
    $region35: #{tpu_custom_call.1} parent=1 // pred_check_branch
      %176 = sbr.rel (0) target = $region37
    $region36: #{tpu_custom_call.1} parent=1 // pred_region
      %s178 = ssub.s32 384, 384
      %179 = vsyncadd [#allocation5], %s178
      %s180 = sshll.u32 [#allocation9], 4
      %s181 = int_to_ptr.vmem [resolvable:$true] %s180
      %186 = dma.vmem_to_hbm [thread:$0]  %s181, 384, %s3, [#allocation5], 128, 128, 8
    $region37: #{tpu_custom_call.1} parent=1 // pred_fallthru
      _
    // Predicated region
    $region38: #{tpu_custom_call.1} parent=1 // pred_check
      _
    $region39: #{tpu_custom_call.1} parent=1 // pred_check_branch
      %188 = sbr.rel (0) target = $region41
    $region40: #{tpu_custom_call.1} parent=1 // pred_region
      %189 = dma.done [#allocation5], 384
    $region41: #{tpu_custom_call.1} parent=1 // pred_fallthru
      _
    %190 = vsyncpa [#allocation4], 1
    %191 = vsyncpa [#allocation7], 1
    %192 = vsyncpa [#allocation5], 1

</llo_original>
